<compile_context>
chip_gen: v7x
topology: tpu7x:2x2x1
jax: 0.10.0
libtpu: 0.0.40
codegen_flags: <defaults>
</compile_context>

<pallas_src>
import math
import functools

import jax
import jax.numpy as jnp
from jax import lax
from jax.experimental import pallas as pl
from jax.experimental.pallas import tpu as pltpu


_EPS = 1e-12  # matches F.normalize default eps


def _round_up(x, mult):
    return ((x + mult - 1) // mult) * mult


# ----------------------------------------------------------------------------
# Prologue: row-wise L2 normalization (used for both x and weight).
# ----------------------------------------------------------------------------
def _l2_normalize_kernel(v_ref, out_ref):
    v = v_ref[...].astype(jnp.float32)                      # (TR, D)
    sumsq = jnp.sum(v * v, axis=-1, keepdims=True)
    # v / max(||v||, eps)  ==  v * rsqrt(max(||v||^2, eps^2))  (rsqrt -> EUP)
    inv = lax.rsqrt(jnp.maximum(sumsq, jnp.float32(_EPS * _EPS)))
    out_ref[...] = (v * inv).astype(out_ref.dtype)


def l2_normalize_rows(v, *, tile_rows):
    R, D = v.shape
    assert R % tile_rows == 0
    return pl.pallas_call(
        _l2_normalize_kernel,
        out_shape=jax.ShapeDtypeStruct((R, D), jnp.float32),
        grid_spec=pltpu.PrefetchScalarGridSpec(
            num_scalar_prefetch=0,
            grid=(R // tile_rows,),
            in_specs=[pl.BlockSpec((tile_rows, D), lambda i: (i, 0))],
            out_specs=pl.BlockSpec((tile_rows, D), lambda i: (i, 0)),
        ),
        compiler_params=pltpu.CompilerParams(
            dimension_semantics=("parallel",)),
    )(v)


# ----------------------------------------------------------------------------
# Main kernel: cosine matmul + circle-loss margins + one-hot select + scale.
# ----------------------------------------------------------------------------
def _circle_loss_kernel(xn_ref, wn_ref, label_ref, out_ref, *, s, m, tn,
                        use_bf16):
    xn = xn_ref[...]                                        # (TB, D) f32
    wn = wn_ref[...]                                        # (TN, D) f32
    label = label_ref[...]                                  # (TB, 1) int32

    if use_bf16:
        xn_mm = xn.astype(jnp.bfloat16)
        wn_mm = wn.astype(jnp.bfloat16)
    else:
        xn_mm = xn
        wn_mm = wn

    # cosine = xn @ wn.T, contracting the last dim of both operands on the MXU
    # without materializing a transpose of the weight tile.
    cosine = lax.dot_general(
        xn_mm, wn_mm,
        dimension_numbers=(((1,), (1,)), ((), ())),
        preferred_element_type=jnp.float32)                 # (TB, TN) f32

    alpha_p = jnp.maximum(1.0 + m - cosine, 0.0)
    alpha_n = jnp.maximum(cosine + m, 0.0)
    sp_y = alpha_p * (cosine - (1.0 - m))                   # margin_p = 1 - m
    sp_j = alpha_n * (cosine - m)                           # margin_n = m

    # One-hot scatter == compare against GLOBAL column index of this N tile.
    j = pl.program_id(1)
    col_ids = lax.broadcasted_iota(jnp.int32, cosine.shape, 1) + j * tn
    out = jnp.where(col_ids == label, sp_y, sp_j) * s
    out_ref[...] = out.astype(out_ref.dtype)


def circle_loss_forward(x, weight, label, *, s, m, tb=128, tn=128,
                        use_bf16_matmul=False):
    """x: (B, D) f32, weight: (N, D) f32, label: (B,) int -> (B, N) f32."""
    B, D = x.shape
    N, D2 = weight.shape
    assert D == D2

    # Pad batch / class dims to tile multiples (padded rows/cols sliced out).
    Bp = _round_up(B, tb)
    Np = _round_up(N, tn)
    x_p = jnp.pad(x, ((0, Bp - B), (0, 0))) if Bp != B else x
    w_p = jnp.pad(weight, ((0, Np - N), (0, 0))) if Np != N else weight
    # Padded label rows get -1 so they never match a real column.
    label_p = jnp.full((Bp, 1), -1, dtype=jnp.int32)
    label_p = label_p.at[:B, 0].set(label.astype(jnp.int32))

    # Normalize once (hoisted out of the (B, N) grid).
    xn = l2_normalize_rows(x_p, tile_rows=tb)
    wn = l2_normalize_rows(w_p, tile_rows=tn)

    kernel = functools.partial(
        _circle_loss_kernel, s=float(s), m=float(m), tn=tn,
        use_bf16=use_bf16_matmul)

    grid = (Bp // tb, Np // tn)

    # Double-buffered per-step working set (keeps us honest on v7x's 64 MiB).
    tile_bytes = 2 * 4 * (tb * D + tn * D + tb * tn + tb)
    vmem_limit = int(min(max(4 * tile_bytes, 16 * 1024 * 1024),
                         64 * 1024 * 1024))

    cost = pl.CostEstimate(
        flops=2 * Bp * Np * D,
        transcendentals=0,
        bytes_accessed=4 * (Bp * D + Np * D + Bp * Np + Bp))

    out = pl.pallas_call(
        kernel,
        out_shape=jax.ShapeDtypeStruct((Bp, Np), jnp.float32),
        grid_spec=pltpu.PrefetchScalarGridSpec(
            num_scalar_prefetch=0,
            grid=grid,
            in_specs=[
                pl.BlockSpec((tb, D), lambda i, j: (i, 0)),   # xn
                pl.BlockSpec((tn, D), lambda i, j: (j, 0)),   # wn
                pl.BlockSpec((tb, 1), lambda i, j: (i, 0)),   # label
            ],
            out_specs=pl.BlockSpec((tb, tn), lambda i, j: (i, j)),
        ),
        compiler_params=pltpu.CompilerParams(
            dimension_semantics=("parallel", "parallel"),
            vmem_limit_bytes=vmem_limit),
        cost_estimate=cost,
    )(xn, wn, label_p)

    return out[:B, :N]


# ----------------------------------------------------------------------------
# Parameter init + pure-JAX reference.
# ----------------------------------------------------------------------------
def init_weight(key, out_features, in_features):
    # kaiming_uniform_(a=sqrt(5)) => bound = 1/sqrt(fan_in)
    bound = 1.0 / math.sqrt(in_features)
    return jax.random.uniform(
        key, (out_features, in_features), dtype=jnp.float32,
        minval=-bound, maxval=bound)


def reference_forward(x, weight, label, *, s, m):
    eps = 1e-12
    xn = x / jnp.maximum(jnp.linalg.norm(x, axis=-1, keepdims=True), eps)
    wn = weight / jnp.maximum(jnp.linalg.norm(weight, axis=-1, keepdims=True), eps)
    cosine = xn @ wn.T
    alpha_p = jnp.maximum(1.0 + m - cosine, 0.0)
    alpha_n = jnp.maximum(cosine + m, 0.0)
    sp_y = alpha_p * (cosine - (1.0 - m))
    sp_j = alpha_n * (cosine - m)
    one_hot = jax.nn.one_hot(label, cosine.shape[1], dtype=jnp.float32)
    return (one_hot * sp_y + (1.0 - one_hot) * sp_j) * s


if __name__ == "__main__":
    B, in_features, out_features = 8, 32, 128
    s_param, m_param = 64.0, 0.35

    key = jax.random.PRNGKey(0)
    kx, kw, kl = jax.random.split(key, 3)

    x = jax.random.normal(kx, (B, in_features), dtype=jnp.float32)
    weight = init_weight(kw, out_features, in_features)
    label = jax.random.randint(kl, (B,), 0, out_features, dtype=jnp.int32)

    out = circle_loss_forward(x, weight, label, s=s_param, m=m_param)
    out = jax.block_until_ready(out)

    ref = reference_forward(x, weight, label, s=s_param, m=m_param)
    assert out.shape == (B, out_features)
    assert jnp.allclose(out, ref, atol=1e-4, rtol=1e-4), "mismatch vs reference"

    print("KERNEL_OK")
</pallas_src>

<mosaic_0001>
module attributes {stable_mosaic.version = 11 : i64} {
  func.func @_l2_normalize_kernel(%arg0: i32, %arg1: memref<128x32xf32, #tpu.memory_space<vmem>>, %arg2: memref<128x32xf32, #tpu.memory_space<vmem>>) attributes {dimension_semantics = [#tpu.dimension_semantics<parallel>], iteration_bounds = array<i64: 1>, scalar_prefetch = 0 : i64, scratch_operands = 0 : i64, tpu.core_type = #tpu.core_type<tc>, window_params = [{transform_indices = @transform_0, window_bounds = array<i64: 128, 32>}, {transform_indices = @transform_1, window_bounds = array<i64: 128, 32>}]} {
    %c0 = arith.constant 0 : index
    %c0_0 = arith.constant 0 : index
    %0 = vector.load %arg1[%c0, %c0_0] : memref<128x32xf32, #tpu.memory_space<vmem>>, vector<128x32xf32>
    %1 = arith.mulf %0, %0 : vector<128x32xf32>
    %cst = arith.constant dense<0.000000e+00> : vector<128xf32>
    %2 = vector.multi_reduction <add>, %1, %cst [1] : vector<128x32xf32> to vector<128xf32>
    %3 = vector.shape_cast %2 : vector<128xf32> to vector<128x1xf32>
    %cst_1 = arith.constant 1.000000e-24 : f32
    %4 = vector.broadcast %cst_1 : f32 to vector<128x1xf32>
    %5 = arith.maximumf %3, %4 : vector<128x1xf32>
    %6 = math.rsqrt %5 : vector<128x1xf32>
    %7 = vector.broadcast %6 : vector<128x1xf32> to vector<128x32xf32>
    %8 = arith.mulf %0, %7 : vector<128x32xf32>
    %c0_2 = arith.constant 0 : index
    %c0_3 = arith.constant 0 : index
    %9 = vector.load %arg2[%c0_2, %c0_3] : memref<128x32xf32, #tpu.memory_space<vmem>>, vector<128x32xf32>
    tpu.vector_store %arg2[%c0_2, %c0_3], %8 {strides = array<i32>} : memref<128x32xf32, #tpu.memory_space<vmem>>, vector<128x32xf32>,
    return
  }
  func.func @transform_0(%arg0: i32) -> (i32, i32) {
    %c0_i32 = arith.constant 0 : i32
    %c0_i32_0 = arith.constant 0 : i32
    return %arg0, %c0_i32 : i32, i32
  }
  func.func @transform_1(%arg0: i32) -> (i32, i32) {
    %c0_i32 = arith.constant 0 : i32
    %c0_i32_0 = arith.constant 0 : i32
    return %arg0, %c0_i32 : i32, i32
  }
}

</mosaic_0001>

<llo_original>
// kernel: tpu_custom_call.1
$region0: #{tpu_custom_call.1}
  #allocation0 [shape = 'u32[]', space=smem, size = 0x4, offset = 0x4, fixed_abs, tag = 'smem constant byte address 0x4 - core index']
  #allocation1 [shape = 'u32[144,128]{1,0:T(1,128)}', space=vmem, size = 0x12000, scoped, tag = 'internal scratch']
  %s0 = inlined_call_operand.vmem [shape: f32[128,32], index: 0, kind: input, shape index: {}]
  %s1 = inlined_call_operand.vmem [shape: f32[128,32], index: 1, kind: output, shape index: {}]
  %s2 = sld [smem:[#allocation0]]
  $region14: #{tpu_custom_call.1} parent=0
    _
  %s4 = ssub.s32 1, %s2
  %s5 = scalar_select 0, %s4, %s2
  // Predicated region
  $region2: #{tpu_custom_call.1} parent=0 // pred_check
    _
  $region3: #{tpu_custom_call.1} parent=0 // pred_check_branch
    %7 = sbr.rel (0) target = $region5
  $region4: #{tpu_custom_call.1} parent=0 // pred_region
    _
  $region5: #{tpu_custom_call.1} parent=0 // pred_fallthru
    _
  %v8 = vld [vmem:[%s0] sm:$0xff]
  %v9 = vld [vmem:[%s0 + $0x8] sm:$0xff]
  %v10 = vld [vmem:[%s0 + $0x10] sm:$0xff]
  %v11 = vld [vmem:[%s0 + $0x18] sm:$0xff]
  %v12 = vld [vmem:[%s0 + $0x20] sm:$0xff]
  %v13 = vld [vmem:[%s0 + $0x28] sm:$0xff]
  %v14 = vld [vmem:[%s0 + $0x30] sm:$0xff]
  %v15 = vld [vmem:[%s0 + $0x38] sm:$0xff]
  %v16 = vld [vmem:[%s0 + $0x40] sm:$0xff]
  %v17 = vld [vmem:[%s0 + $0x48] sm:$0xff]
  %v18 = vld [vmem:[%s0 + $0x50] sm:$0xff]
  %v19 = vld [vmem:[%s0 + $0x58] sm:$0xff]
  %v20 = vld [vmem:[%s0 + $0x60] sm:$0xff]
  %v21 = vld [vmem:[%s0 + $0x68] sm:$0xff]
  %v22 = vld [vmem:[%s0 + $0x70] sm:$0xff]
  %v23 = vld [vmem:[%s0 + $0x78] sm:$0xff]
  %v24 = vmul.f32 %v8, %v8
  %v25 = vmul.f32 %v9, %v9
  %v26 = vmul.f32 %v10, %v10
  %v27 = vmul.f32 %v11, %v11
  %v28 = vmul.f32 %v12, %v12
  %v29 = vmul.f32 %v13, %v13
  %v30 = vmul.f32 %v14, %v14
  %v31 = vmul.f32 %v15, %v15
  %v32 = vmul.f32 %v16, %v16
  %v33 = vmul.f32 %v17, %v17
  %v34 = vmul.f32 %v18, %v18
  %v35 = vmul.f32 %v19, %v19
  %v36 = vmul.f32 %v20, %v20
  %v37 = vmul.f32 %v21, %v21
  %v38 = vmul.f32 %v22, %v22
  %v39 = vmul.f32 %v23, %v23
  %vm40 = vcmask 261120
  %v41 = vsel %vm40, %v24, 0.0
  %42 = vadd.xlane.f32.xlu0 %v41
  %v43 = vpop.xlane.xlu0 %42
  %v44 = vsel %vm40, %v25, 0.0
  %45 = vadd.xlane.f32.xlu0 %v44
  %v46 = vpop.xlane.xlu0 %45
  %v47 = vsel %vm40, %v26, 0.0
  %48 = vadd.xlane.f32.xlu0 %v47
  %v49 = vpop.xlane.xlu0 %48
  %v50 = vsel %vm40, %v27, 0.0
  %51 = vadd.xlane.f32.xlu0 %v50
  %v52 = vpop.xlane.xlu0 %51
  %v53 = vsel %vm40, %v28, 0.0
  %54 = vadd.xlane.f32.xlu0 %v53
  %v55 = vpop.xlane.xlu0 %54
  %v56 = vsel %vm40, %v29, 0.0
  %57 = vadd.xlane.f32.xlu0 %v56
  %v58 = vpop.xlane.xlu0 %57
  %v59 = vsel %vm40, %v30, 0.0
  %60 = vadd.xlane.f32.xlu0 %v59
  %v61 = vpop.xlane.xlu0 %60
  %v62 = vsel %vm40, %v31, 0.0
  %63 = vadd.xlane.f32.xlu0 %v62
  %v64 = vpop.xlane.xlu0 %63
  %v65 = vsel %vm40, %v32, 0.0
  %66 = vadd.xlane.f32.xlu0 %v65
  %v67 = vpop.xlane.xlu0 %66
  %v68 = vsel %vm40, %v33, 0.0
  %69 = vadd.xlane.f32.xlu0 %v68
  %v70 = vpop.xlane.xlu0 %69
  %v71 = vsel %vm40, %v34, 0.0
  %72 = vadd.xlane.f32.xlu0 %v71
  %v73 = vpop.xlane.xlu0 %72
  %v74 = vsel %vm40, %v35, 0.0
  %75 = vadd.xlane.f32.xlu0 %v74
  %v76 = vpop.xlane.xlu0 %75
  %v77 = vsel %vm40, %v36, 0.0
  %78 = vadd.xlane.f32.xlu0 %v77
  %v79 = vpop.xlane.xlu0 %78
  %v80 = vsel %vm40, %v37, 0.0
  %81 = vadd.xlane.f32.xlu0 %v80
  %v82 = vpop.xlane.xlu0 %81
  %v83 = vsel %vm40, %v38, 0.0
  %84 = vadd.xlane.f32.xlu0 %v83
  %v85 = vpop.xlane.xlu0 %84
  %v86 = vsel %vm40, %v39, 0.0
  %87 = vadd.xlane.f32.xlu0 %v86
  %v88 = vpop.xlane.xlu0 %87
  %v89 = vmax.f32 %v43, 1e-24
  %v90 = vmax.f32 %v46, 1e-24
  %v91 = vmax.f32 %v49, 1e-24
  %v92 = vmax.f32 %v52, 1e-24
  %v93 = vmax.f32 %v55, 1e-24
  %v94 = vmax.f32 %v58, 1e-24
  %v95 = vmax.f32 %v61, 1e-24
  %v96 = vmax.f32 %v64, 1e-24
  %v97 = vmax.f32 %v67, 1e-24
  %v98 = vmax.f32 %v70, 1e-24
  %v99 = vmax.f32 %v73, 1e-24
  %v100 = vmax.f32 %v76, 1e-24
  %v101 = vmax.f32 %v79, 1e-24
  %v102 = vmax.f32 %v82, 1e-24
  %v103 = vmax.f32 %v85, 1e-24
  %v104 = vmax.f32 %v88, 1e-24
  %v105 = vrsqrt.pop %v89
  %v106 = vrsqrt.pop %v90
  %v107 = vrsqrt.pop %v91
  %v108 = vrsqrt.pop %v92
  %v109 = vrsqrt.pop %v93
  %v110 = vrsqrt.pop %v94
  %v111 = vrsqrt.pop %v95
  %v112 = vrsqrt.pop %v96
  %v113 = vrsqrt.pop %v97
  %v114 = vrsqrt.pop %v98
  %v115 = vrsqrt.pop %v99
  %v116 = vrsqrt.pop %v100
  %v117 = vrsqrt.pop %v101
  %v118 = vrsqrt.pop %v102
  %v119 = vrsqrt.pop %v103
  %v120 = vrsqrt.pop %v104
  %v121 = vmul.f32 %v8, %v105
  %v122 = vmul.f32 %v9, %v106
  %v123 = vmul.f32 %v10, %v107
  %v124 = vmul.f32 %v11, %v108
  %v125 = vmul.f32 %v12, %v109
  %v126 = vmul.f32 %v13, %v110
  %v127 = vmul.f32 %v14, %v111
  %v128 = vmul.f32 %v15, %v112
  %v129 = vmul.f32 %v16, %v113
  %v130 = vmul.f32 %v17, %v114
  %v131 = vmul.f32 %v18, %v115
  %v132 = vmul.f32 %v19, %v116
  %v133 = vmul.f32 %v20, %v117
  %v134 = vmul.f32 %v21, %v118
  %v135 = vmul.f32 %v22, %v119
  %v136 = vmul.f32 %v23, %v120
  %137 = vst.msk [vmem:[%s1] sm:$0xff] %vm40, %v121
  %138 = vst.msk [vmem:[%s1 + $0x8] sm:$0xff] %vm40, %v122
  %139 = vst.msk [vmem:[%s1 + $0x10] sm:$0xff] %vm40, %v123
  %140 = vst.msk [vmem:[%s1 + $0x18] sm:$0xff] %vm40, %v124
  %141 = vst.msk [vmem:[%s1 + $0x20] sm:$0xff] %vm40, %v125
  %142 = vst.msk [vmem:[%s1 + $0x28] sm:$0xff] %vm40, %v126
  %143 = vst.msk [vmem:[%s1 + $0x30] sm:$0xff] %vm40, %v127
  %144 = vst.msk [vmem:[%s1 + $0x38] sm:$0xff] %vm40, %v128
  %145 = vst.msk [vmem:[%s1 + $0x40] sm:$0xff] %vm40, %v129
  %146 = vst.msk [vmem:[%s1 + $0x48] sm:$0xff] %vm40, %v130
  %147 = vst.msk [vmem:[%s1 + $0x50] sm:$0xff] %vm40, %v131
  %148 = vst.msk [vmem:[%s1 + $0x58] sm:$0xff] %vm40, %v132
  %149 = vst.msk [vmem:[%s1 + $0x60] sm:$0xff] %vm40, %v133
  %150 = vst.msk [vmem:[%s1 + $0x68] sm:$0xff] %vm40, %v134
  %151 = vst.msk [vmem:[%s1 + $0x70] sm:$0xff] %vm40, %v135
  %152 = vst.msk [vmem:[%s1 + $0x78] sm:$0xff] %vm40, %v136
  // Predicated region
  $region6: #{tpu_custom_call.1} parent=0 // pred_check
    _
  $region7: #{tpu_custom_call.1} parent=0 // pred_check_branch
    %154 = sbr.rel (0) target = $region9
  $region8: #{tpu_custom_call.1} parent=0 // pred_region
    _
  $region9: #{tpu_custom_call.1} parent=0 // pred_fallthru
    _
  // Predicated region
  $region10: #{tpu_custom_call.1} parent=0 // pred_check
    _
  $region11: #{tpu_custom_call.1} parent=0 // pred_check_branch
    %156 = sbr.rel (0) target = $region13
  $region12: #{tpu_custom_call.1} parent=0 // pred_region
    _
  $region13: #{tpu_custom_call.1} parent=0 // pred_fallthru
    _

</llo_original>
